<compile_context>
chip_gen: v6e
topology: v6e:2x2x1
jax: 0.10.0
libtpu: 0.0.40
codegen_flags: <defaults>
</compile_context>

<pallas_src>
import jax
import jax.numpy as jnp
from jax.experimental import pallas as pl
from jax.experimental.pallas import tpu as pltpu

INPUT_SIZE = 438
HIDDEN_SIZE = 70
OUTPUT_SIZE = 2


def _round_up(x, m):
    return ((x + m - 1) // m) * m


def mlp_kernel(x_ref, w1_ref, b1_ref, w2_ref, b2_ref, o_ref):
    # fc1: f32 operands, f32 accumulation on the MXU, bias + ReLU on the VPU.
    h = jnp.dot(x_ref[...], w1_ref[...], preferred_element_type=jnp.float32)
    h = jnp.maximum(h + b1_ref[...], 0.0)
    # fc2: tiny (70 -> 2) matmul, still f32.
    y = jnp.dot(h, w2_ref[...], preferred_element_type=jnp.float32)
    o_ref[...] = (y + b2_ref[...]).astype(o_ref.dtype)


def general_fake_news_forward(x, w1, b1, w2, b2, *, block_b=2048):
    """x:(B,438) f32, w1:(438,70), b1:(1,70), w2:(70,2), b2:(1,2) -> (B,2) f32."""
    B = x.shape[0]

    x = x.astype(jnp.float32)
    w1 = w1.astype(jnp.float32)
    b1 = b1.astype(jnp.float32)
    w2 = w2.astype(jnp.float32)
    b2 = b2.astype(jnp.float32)

    # Batch tile: multiple of 8 sublanes; cap at ceil(B/2) so large batches
    # produce >=2 grid steps (feeds both TensorCores on v7x); small batches
    # fall back to a single 8-row-aligned tile (reads past B are padded,
    # writes are clipped by Pallas).
    tb = max(8, min(block_b, _round_up((B + 1) // 2, 8)))
    grid = (pl.cdiv(B, tb),)

    cost = pl.CostEstimate(
        flops=2 * B * (INPUT_SIZE * HIDDEN_SIZE + HIDDEN_SIZE * OUTPUT_SIZE),
        transcendentals=0,
        bytes_accessed=(B * INPUT_SIZE * 4            # x (f32)
                        + INPUT_SIZE * HIDDEN_SIZE * 4  # w1
                        + HIDDEN_SIZE * 4               # b1
                        + HIDDEN_SIZE * OUTPUT_SIZE * 4 # w2
                        + OUTPUT_SIZE * 4               # b2
                        + B * OUTPUT_SIZE * 4),         # output
    )

    def resident(shape):
        # Same block for every grid step -> DMA'd once, stays VMEM-resident.
        return pl.BlockSpec(shape, lambda i: (0, 0))

    out = pl.pallas_call(
        mlp_kernel,
        out_shape=jax.ShapeDtypeStruct((B, OUTPUT_SIZE), jnp.float32),
        grid=grid,
        in_specs=[
            pl.BlockSpec((tb, INPUT_SIZE), lambda i: (i, 0)),   # x: batch-tiled
            resident((INPUT_SIZE, HIDDEN_SIZE)),                # w1
            resident((1, HIDDEN_SIZE)),                         # b1
            resident((HIDDEN_SIZE, OUTPUT_SIZE)),               # w2
            resident((1, OUTPUT_SIZE)),                         # b2
        ],
        out_specs=pl.BlockSpec((tb, OUTPUT_SIZE), lambda i: (i, 0)),
        compiler_params=pltpu.CompilerParams(
            dimension_semantics=("parallel",),   # megacore sharding on v7x
        ),
        cost_estimate=cost,
    )(x, w1, b1, w2, b2)

    return out


def reference_forward_f32(x, w1, b1, w2, b2):
    h = jnp.maximum(x @ w1 + b1, 0.0)
    return h @ w2 + b2


if __name__ == "__main__":
    key = jax.random.PRNGKey(0)
    k_x, k_w1, k_b1, k_w2, k_b2 = jax.random.split(key, 5)

    batch = 8
    x = jax.random.normal(k_x, (batch, INPUT_SIZE), dtype=jnp.float32)

    # PyTorch-style uniform(-1/sqrt(fan_in), 1/sqrt(fan_in)) init.
    bound1 = 1.0 / (INPUT_SIZE ** 0.5)
    bound2 = 1.0 / (HIDDEN_SIZE ** 0.5)
    w1 = jax.random.uniform(k_w1, (INPUT_SIZE, HIDDEN_SIZE), jnp.float32, -bound1, bound1)
    b1 = jax.random.uniform(k_b1, (1, HIDDEN_SIZE), jnp.float32, -bound1, bound1)
    w2 = jax.random.uniform(k_w2, (HIDDEN_SIZE, OUTPUT_SIZE), jnp.float32, -bound2, bound2)
    b2 = jax.random.uniform(k_b2, (1, OUTPUT_SIZE), jnp.float32, -bound2, bound2)

    out = general_fake_news_forward(x, w1, b1, w2, b2)
    out = jax.block_until_ready(out)
    assert out.shape == (batch, OUTPUT_SIZE)

    # Full-f32 reference; kernel runs the same f32 path (MXU f32 accumulation).
    ref = reference_forward_f32(x, w1, b1, w2, b2)
    assert jnp.allclose(out, ref, atol=1e-2, rtol=1e-2), (
        jnp.max(jnp.abs(out - ref)))

    # Also exercise a ragged / multi-block batch to check tile clipping.
    big_b = 1000
    xb = jax.random.normal(k_x, (big_b, INPUT_SIZE), dtype=jnp.float32)
    out_big = jax.block_until_ready(
        general_fake_news_forward(xb, w1, b1, w2, b2, block_b=256))
    ref_big = reference_forward_f32(xb, w1, b1, w2, b2)
    assert out_big.shape == (big_b, OUTPUT_SIZE)
    assert jnp.allclose(out_big, ref_big, atol=1e-2, rtol=1e-2)

    print("KERNEL_OK")
</pallas_src>

<mosaic_0001>
module attributes {stable_mosaic.version = 11 : i64} {
  func.func @mlp_kernel(%arg0: i32, %arg1: memref<8x438xf32, #tpu.memory_space<vmem>>, %arg2: memref<438x70xf32, #tpu.memory_space<vmem>>, %arg3: memref<1x70xf32, #tpu.memory_space<vmem>>, %arg4: memref<70x2xf32, #tpu.memory_space<vmem>>, %arg5: memref<1x2xf32, #tpu.memory_space<vmem>>, %arg6: memref<8x2xf32, #tpu.memory_space<vmem>>) attributes {dimension_semantics = [#tpu.dimension_semantics<parallel>], iteration_bounds = array<i64: 1>, scalar_prefetch = 0 : i64, scratch_operands = 0 : i64, tpu.core_type = #tpu.core_type<tc>, window_params = [{transform_indices = @transform_0, window_bounds = array<i64: 8, 438>}, {pipeline_mode = #tpu.pipeline_mode<synchronous>, transform_indices = @transform_1, window_bounds = array<i64: 438, 70>}, {pipeline_mode = #tpu.pipeline_mode<synchronous>, transform_indices = @transform_2, window_bounds = array<i64: 1, 70>}, {pipeline_mode = #tpu.pipeline_mode<synchronous>, transform_indices = @transform_3, window_bounds = array<i64: 70, 2>}, {pipeline_mode = #tpu.pipeline_mode<synchronous>, transform_indices = @transform_4, window_bounds = array<i64: 1, 2>}, {transform_indices = @transform_5, window_bounds = array<i64: 8, 2>}]} {
    %c0 = arith.constant 0 : index
    %c0_0 = arith.constant 0 : index
    %0 = vector.load %arg1[%c0, %c0_0] : memref<8x438xf32, #tpu.memory_space<vmem>>, vector<8x438xf32>
    %c0_1 = arith.constant 0 : index
    %c0_2 = arith.constant 0 : index
    %1 = vector.load %arg2[%c0_1, %c0_2] : memref<438x70xf32, #tpu.memory_space<vmem>>, vector<438x70xf32>
    %cst = arith.constant dense<0.000000e+00> : vector<8x70xf32>
    %2 = tpu.matmul %0, %1, %cst {dimension_numbers = #tpu.dot_dimension_numbers<[1], [0], [0], [1], [0, 0, 1, 1], [], []>} : vector<8x438xf32>, vector<438x70xf32>, vector<8x70xf32> -> vector<8x70xf32>
    %c0_3 = arith.constant 0 : index
    %c0_4 = arith.constant 0 : index
    %3 = vector.load %arg3[%c0_3, %c0_4] : memref<1x70xf32, #tpu.memory_space<vmem>>, vector<1x70xf32>
    %4 = vector.broadcast %3 : vector<1x70xf32> to vector<8x70xf32>
    %5 = arith.addf %2, %4 : vector<8x70xf32>
    %cst_5 = arith.constant 0.000000e+00 : f32
    %6 = vector.broadcast %cst_5 : f32 to vector<8x70xf32>
    %7 = arith.maximumf %5, %6 : vector<8x70xf32>
    %c0_6 = arith.constant 0 : index
    %c0_7 = arith.constant 0 : index
    %8 = vector.load %arg4[%c0_6, %c0_7] : memref<70x2xf32, #tpu.memory_space<vmem>>, vector<70x2xf32>
    %cst_8 = arith.constant dense<0.000000e+00> : vector<8x2xf32>
    %9 = tpu.matmul %7, %8, %cst_8 {dimension_numbers = #tpu.dot_dimension_numbers<[1], [0], [0], [1], [0, 0, 1, 1], [], []>} : vector<8x70xf32>, vector<70x2xf32>, vector<8x2xf32> -> vector<8x2xf32>
    %c0_9 = arith.constant 0 : index
    %c0_10 = arith.constant 0 : index
    %10 = vector.load %arg5[%c0_9, %c0_10] : memref<1x2xf32, #tpu.memory_space<vmem>>, vector<1x2xf32>
    %11 = vector.broadcast %10 : vector<1x2xf32> to vector<8x2xf32>
    %12 = arith.addf %9, %11 : vector<8x2xf32>
    %c0_11 = arith.constant 0 : index
    %c0_12 = arith.constant 0 : index
    %13 = vector.load %arg6[%c0_11, %c0_12] : memref<8x2xf32, #tpu.memory_space<vmem>>, vector<8x2xf32>
    tpu.vector_store %arg6[%c0_11, %c0_12], %12 {strides = array<i32>} : memref<8x2xf32, #tpu.memory_space<vmem>>, vector<8x2xf32>,
    return
  }
  func.func @transform_0(%arg0: i32) -> (i32, i32) {
    %c0_i32 = arith.constant 0 : i32
    %c0_i32_0 = arith.constant 0 : i32
    return %arg0, %c0_i32 : i32, i32
  }
  func.func @transform_1(%arg0: i32) -> (i32, i32) {
    %c0_i32 = arith.constant 0 : i32
    %c0_i32_0 = arith.constant 0 : i32
    %c0_i32_1 = arith.constant 0 : i32
    return %c0_i32, %c0_i32_0 : i32, i32
  }
  func.func @transform_2(%arg0: i32) -> (i32, i32) {
    %c0_i32 = arith.constant 0 : i32
    %c0_i32_0 = arith.constant 0 : i32
    %c0_i32_1 = arith.constant 0 : i32
    return %c0_i32, %c0_i32_0 : i32, i32
  }
  func.func @transform_3(%arg0: i32) -> (i32, i32) {
    %c0_i32 = arith.constant 0 : i32
    %c0_i32_0 = arith.constant 0 : i32
    %c0_i32_1 = arith.constant 0 : i32
    return %c0_i32, %c0_i32_0 : i32, i32
  }
  func.func @transform_4(%arg0: i32) -> (i32, i32) {
    %c0_i32 = arith.constant 0 : i32
    %c0_i32_0 = arith.constant 0 : i32
    %c0_i32_1 = arith.constant 0 : i32
    return %c0_i32, %c0_i32_0 : i32, i32
  }
  func.func @transform_5(%arg0: i32) -> (i32, i32) {
    %c0_i32 = arith.constant 0 : i32
    %c0_i32_0 = arith.constant 0 : i32
    return %arg0, %c0_i32 : i32, i32
  }
}

</mosaic_0001>

<llo_original>
// kernel: tpu_custom_call.1
$region0: #{tpu_custom_call.1}
  #allocation0 [shape = 'u32[]', space=smem, size = 0x4, offset = 0x4, fixed_abs, tag = 'smem constant byte address 0x4 - core index']
  #allocation1 [shape = 'u32[144,128]{1,0:T(1,128)}', space=vmem, size = 0x12000, scoped, tag = 'internal scratch']
  %s0 = inlined_call_operand.vmem [shape: f32[8,438], index: 0, kind: input, shape index: {}]
  %s1 = inlined_call_operand.vmem [shape: f32[438,70], index: 1, kind: input, shape index: {}]
  %s2 = inlined_call_operand.vmem [shape: f32[1,70], index: 2, kind: input, shape index: {}]
  %s3 = inlined_call_operand.vmem [shape: f32[70,2], index: 3, kind: input, shape index: {}]
  %s4 = inlined_call_operand.vmem [shape: f32[1,2], index: 4, kind: input, shape index: {}]
  %s5 = inlined_call_operand.vmem [shape: f32[8,2], index: 5, kind: output, shape index: {}]
  %s6 = sld [smem:[#allocation0]]
  $region30: #{tpu_custom_call.1} parent=0
    _
  %s8 = ssub.s32 1, %s6
  %s9 = scalar_select 0, %s8, %s6
  // Predicated region
  $region2: #{tpu_custom_call.1} parent=0 // pred_check
    _
  $region3: #{tpu_custom_call.1} parent=0 // pred_check_branch
    %11 = sbr.rel (0) target = $region5
  $region4: #{tpu_custom_call.1} parent=0 // pred_region
    _
  $region5: #{tpu_custom_call.1} parent=0 // pred_fallthru
    _
  // Predicated region
  $region6: #{tpu_custom_call.1} parent=0 // pred_check
    _
  $region7: #{tpu_custom_call.1} parent=0 // pred_check_branch
    %13 = sbr.rel (0) target = $region9
  $region8: #{tpu_custom_call.1} parent=0 // pred_region
    _
  $region9: #{tpu_custom_call.1} parent=0 // pred_fallthru
    _
  // Predicated region
  $region10: #{tpu_custom_call.1} parent=0 // pred_check
    _
  $region11: #{tpu_custom_call.1} parent=0 // pred_check_branch
    %15 = sbr.rel (0) target = $region13
  $region12: #{tpu_custom_call.1} parent=0 // pred_region
    _
  $region13: #{tpu_custom_call.1} parent=0 // pred_fallthru
    _
  // Predicated region
  $region14: #{tpu_custom_call.1} parent=0 // pred_check
    _
  $region15: #{tpu_custom_call.1} parent=0 // pred_check_branch
    %17 = sbr.rel (0) target = $region17
  $region16: #{tpu_custom_call.1} parent=0 // pred_region
    _
  $region17: #{tpu_custom_call.1} parent=0 // pred_fallthru
    _
  // Predicated region
  $region18: #{tpu_custom_call.1} parent=0 // pred_check
    _
  $region19: #{tpu_custom_call.1} parent=0 // pred_check_branch
    %19 = sbr.rel (0) target = $region21
  $region20: #{tpu_custom_call.1} parent=0 // pred_region
    _
  $region21: #{tpu_custom_call.1} parent=0 // pred_fallthru
    _
  %v20 = vld [vmem:[%s0] sm:$0xff]
  %v21 = vld [vmem:[%s0 + $0x8] sm:$0xff]
  %v22 = vld [vmem:[%s0 + $0x10] sm:$0xff]
  %v23 = vld [vmem:[%s0 + $0x18] sm:$0xff]
  %v24 = vld [vmem:[%s1] sm:$0xff]
  %v25 = vld [vmem:[%s1 + $0x8] sm:$0xff]
  %v26 = vld [vmem:[%s1 + $0x10] sm:$0xff]
  %v27 = vld [vmem:[%s1 + $0x18] sm:$0xff]
  %v28 = vld [vmem:[%s1 + $0x20] sm:$0xff]
  %v29 = vld [vmem:[%s1 + $0x28] sm:$0xff]
  %v30 = vld [vmem:[%s1 + $0x30] sm:$0xff]
  %v31 = vld [vmem:[%s1 + $0x38] sm:$0xff]
  %v32 = vld [vmem:[%s1 + $0x40] sm:$0xff]
  %v33 = vld [vmem:[%s1 + $0x48] sm:$0xff]
  %v34 = vld [vmem:[%s1 + $0x50] sm:$0xff]
  %v35 = vld [vmem:[%s1 + $0x58] sm:$0xff]
  %v36 = vld [vmem:[%s1 + $0x60] sm:$0xff]
  %v37 = vld [vmem:[%s1 + $0x68] sm:$0xff]
  %v38 = vld [vmem:[%s1 + $0x70] sm:$0xff]
  %v39 = vld [vmem:[%s1 + $0x78] sm:$0xff]
  %v40 = vld [vmem:[%s1 + $0x80] sm:$0xff]
  %v41 = vld [vmem:[%s1 + $0x88] sm:$0xff]
  %v42 = vld [vmem:[%s1 + $0x90] sm:$0xff]
  %v43 = vld [vmem:[%s1 + $0x98] sm:$0xff]
  %v44 = vld [vmem:[%s1 + $0xa0] sm:$0xff]
  %v45 = vld [vmem:[%s1 + $0xa8] sm:$0xff]
  %v46 = vld [vmem:[%s1 + $0xb0] sm:$0xff]
  %v47 = vld [vmem:[%s1 + $0xb8] sm:$0xff]
  %v48 = vld [vmem:[%s1 + $0xc0] sm:$0xff]
  %v49 = vld [vmem:[%s1 + $0xc8] sm:$0xff]
  %v50 = vld [vmem:[%s1 + $0xd0] sm:$0xff]
  %v51 = vld [vmem:[%s1 + $0xd8] sm:$0xff]
  %v52 = vld [vmem:[%s1 + $0xe0] sm:$0xff]
  %v53 = vld [vmem:[%s1 + $0xe8] sm:$0xff]
  %v54 = vld [vmem:[%s1 + $0xf0] sm:$0xff]
  %v55 = vld [vmem:[%s1 + $0xf8] sm:$0xff]
  %v56 = vld [vmem:[%s1 + $0x100] sm:$0xff]
  %v57 = vld [vmem:[%s1 + $0x108] sm:$0xff]
  %v58 = vld [vmem:[%s1 + $0x110] sm:$0xff]
  %v59 = vld [vmem:[%s1 + $0x118] sm:$0xff]
  %v60 = vld [vmem:[%s1 + $0x120] sm:$0xff]
  %v61 = vld [vmem:[%s1 + $0x128] sm:$0xff]
  %v62 = vld [vmem:[%s1 + $0x130] sm:$0xff]
  %v63 = vld [vmem:[%s1 + $0x138] sm:$0xff]
  %v64 = vld [vmem:[%s1 + $0x140] sm:$0xff]
  %v65 = vld [vmem:[%s1 + $0x148] sm:$0xff]
  %v66 = vld [vmem:[%s1 + $0x150] sm:$0xff]
  %v67 = vld [vmem:[%s1 + $0x158] sm:$0xff]
  %v68 = vld [vmem:[%s1 + $0x160] sm:$0xff]
  %v69 = vld [vmem:[%s1 + $0x168] sm:$0xff]
  %v70 = vld [vmem:[%s1 + $0x170] sm:$0xff]
  %v71 = vld [vmem:[%s1 + $0x178] sm:$0xff]
  %v72 = vld [vmem:[%s1 + $0x180] sm:$0xff]
  %v73 = vld [vmem:[%s1 + $0x188] sm:$0xff]
  %v74 = vld [vmem:[%s1 + $0x190] sm:$0xff]
  %v75 = vld [vmem:[%s1 + $0x198] sm:$0xff]
  %v76 = vld [vmem:[%s1 + $0x1a0] sm:$0xff]
  %v77 = vld [vmem:[%s1 + $0x1a8] sm:$0xff]
  %v78 = vld [vmem:[%s1 + $0x1b0] sm:$0x3f]
  %v79 = vld [vmem:[%s2] sm:$0x1]
  %v81 = vlaneseq
  %v82 = vshrl.u32 %v81, 7
  %v83 = vsub.s32 0, %v82
  %v84 = vrot.slane %v79, %v83
  %vm86 = vcmask 441344
  %v88 = vsel %vm86, %v23, 0
  %vm90 = vcmask 1045504
  %v92 = vsel %vm90, %v78, 0
  %94 = vmatprep.subr.mxu0 0.0
  %95 = vmatpush1.msra.mxu0 %v39
  %96 = vmatprep.subr.mxu0 0.0
  %97 = vmatpush1.msra.mxu0 %v38
  %98 = vmatprep.subr.mxu0 0.0
  %99 = vmatpush1.msra.mxu0 %v37
  %100 = vmatprep.subr.mxu0 0.0
  %101 = vmatpush1.msra.mxu0 %v36
  %102 = vmatprep.subr.mxu0 0.0
  %103 = vmatpush1.msra.mxu0 %v35
  %104 = vmatprep.subr.mxu0 0.0
  %105 = vmatpush1.msra.mxu0 %v34
  %106 = vmatprep.subr.mxu0 0.0
  %107 = vmatpush1.msra.mxu0 %v33
  %108 = vmatprep.subr.mxu0 0.0
  %109 = vmatpush1.msra.mxu0 %v32
  %110 = vmatprep.subr.mxu0 0.0
  %111 = vmatpush1.msra.mxu0 %v31
  %112 = vmatprep.subr.mxu0 0.0
  %113 = vmatpush1.msra.mxu0 %v30
  %114 = vmatprep.subr.mxu0 0.0
  %115 = vmatpush1.msra.mxu0 %v29
  %116 = vmatprep.subr.mxu0 0.0
  %117 = vmatpush1.msra.mxu0 %v28
  %118 = vmatprep.subr.mxu0 0.0
  %119 = vmatpush1.msra.mxu0 %v27
  %120 = vmatprep.subr.mxu0 0.0
  %121 = vmatpush1.msra.mxu0 %v26
  %122 = vmatprep.subr.mxu0 0.0
  %123 = vmatpush1.msra.mxu0 %v25
  %124 = vmatprep.subr.mxu0 0.0
  %125 = vmatpush1.msra.mxu0 %v24
  %126 = vmatprep.subr.mxu0 0.0
  %127 = vmatpush2.msra.mxu0 %v55
  %128 = vmatprep.subr.mxu0 0.0
  %129 = vmatpush2.msra.mxu0 %v54
  %130 = vmatprep.subr.mxu0 0.0
  %131 = vmatpush2.msra.mxu0 %v53
  %132 = vmatprep.subr.mxu0 0.0
  %133 = vmatpush2.msra.mxu0 %v52
  %134 = vmatprep.subr.mxu0 0.0
  %135 = vmatpush2.msra.mxu0 %v51
  %136 = vmatprep.subr.mxu0 0.0
  %137 = vmatpush2.msra.mxu0 %v50
  %138 = vmatprep.subr.mxu0 0.0
  %139 = vmatpush2.msra.mxu0 %v49
  %140 = vmatprep.subr.mxu0 0.0
  %141 = vmatpush2.msra.mxu0 %v48
  %142 = vmatprep.subr.mxu0 0.0
  %143 = vmatpush2.msra.mxu0 %v47
  %144 = vmatprep.subr.mxu0 0.0
  %145 = vmatpush2.msra.mxu0 %v46
  %146 = vmatprep.subr.mxu0 0.0
  %147 = vmatpush2.msra.mxu0 %v45
  %148 = vmatprep.subr.mxu0 0.0
  %149 = vmatpush2.msra.mxu0 %v44
  %150 = vmatprep.subr.mxu0 0.0
  %151 = vmatpush2.msra.mxu0 %v43
  %152 = vmatprep.subr.mxu0 0.0
  %153 = vmatpush2.msra.mxu0 %v42
  %154 = vmatprep.subr.mxu0 0.0
  %155 = vmatpush2.msra.mxu0 %v41
  %156 = vmatprep.subr.mxu0 0.0
  %157 = vmatpush2.msra.mxu0 %v40
  %158 = vmatprep.mubr.f32.mxu0 %v21
  %159 = vmatmul.mubr.f32.gmra.mxu0 %v20
  %v160 = vpop.f32.mrf.mxu0
  %v161 = vadd.f32 %v84, %v160
  %v162 = vpop.f32.mrf.mxu0
  %163 = vdwg.mxu0
  %164 = vmatprep.subr.mxu0 0.0
  %165 = vmatpush1.msra.mxu0 %v71
  %166 = vmatprep.subr.mxu0 0.0
  %167 = vmatpush1.msra.mxu0 %v70
  %168 = vmatprep.subr.mxu0 0.0
  %169 = vmatpush1.msra.mxu0 %v69
  %170 = vmatprep.subr.mxu0 0.0
  %171 = vmatpush1.msra.mxu0 %v68
  %172 = vmatprep.subr.mxu0 0.0
  %173 = vmatpush1.msra.mxu0 %v67
  %174 = vmatprep.subr.mxu0 0.0
  %175 = vmatpush1.msra.mxu0 %v66
  %176 = vmatprep.subr.mxu0 0.0
  %177 = vmatpush1.msra.mxu0 %v65
  %178 = vmatprep.subr.mxu0 0.0
  %179 = vmatpush1.msra.mxu0 %v64
  %180 = vmatprep.subr.mxu0 0.0
  %181 = vmatpush1.msra.mxu0 %v63
  %182 = vmatprep.subr.mxu0 0.0
  %183 = vmatpush1.msra.mxu0 %v62
  %184 = vmatprep.subr.mxu0 0.0
  %185 = vmatpush1.msra.mxu0 %v61
  %186 = vmatprep.subr.mxu0 0.0
  %187 = vmatpush1.msra.mxu0 %v60
  %188 = vmatprep.subr.mxu0 0.0
  %189 = vmatpush1.msra.mxu0 %v59
  %190 = vmatprep.subr.mxu0 0.0
  %191 = vmatpush1.msra.mxu0 %v58
  %192 = vmatprep.subr.mxu0 0.0
  %193 = vmatpush1.msra.mxu0 %v57
  %194 = vmatprep.subr.mxu0 0.0
  %195 = vmatpush1.msra.mxu0 %v56
  %196 = vmatprep.subr.mxu0 0.0
  %197 = vmatpush2.msra.mxu0 0.0
  %198 = vmatprep.subr.mxu0 0.0
  %199 = vmatpush2.msra.mxu0 0.0
  %200 = vmatprep.subr.mxu0 0.0
  %201 = vmatpush2.msra.mxu0 0.0
  %202 = vmatprep.subr.mxu0 0.0
  %203 = vmatpush2.msra.mxu0 0.0
  %204 = vmatprep.subr.mxu0 0.0
  %205 = vmatpush2.msra.mxu0 0.0
  %206 = vmatprep.subr.mxu0 0.0
  %207 = vmatpush2.msra.mxu0 0.0
  %208 = vmatprep.subr.mxu0 0.0
  %209 = vmatpush2.msra.mxu0 0.0
  %210 = vmatprep.subr.mxu0 0.0
  %211 = vmatpush2.msra.mxu0 0.0
  %212 = vmatprep.subr.mxu0 0.0
  %213 = vmatpush2.msra.mxu0 0.0
  %214 = vmatprep.subr.mxu0 0.0
  %215 = vmatpush2.msra.mxu0 %v92
  %216 = vmatprep.subr.mxu0 0.0
  %217 = vmatpush2.msra.mxu0 %v77
  %218 = vmatprep.subr.mxu0 0.0
  %219 = vmatpush2.msra.mxu0 %v76
  %220 = vmatprep.subr.mxu0 0.0
  %221 = vmatpush2.msra.mxu0 %v75
  %222 = vmatprep.subr.mxu0 0.0
  %223 = vmatpush2.msra.mxu0 %v74
  %224 = vmatprep.subr.mxu0 0.0
  %225 = vmatpush2.msra.mxu0 %v73
  %226 = vmatprep.subr.mxu0 0.0
  %227 = vmatpush2.msra.mxu0 %v72
  %228 = vmatprep.mubr.f32.mxu0 %v88
  %229 = vmatmul.mubr.f32.gmra.mxu0 %v22
  %v230 = vpop.f32.mrf.mxu0
  %v231 = vadd.f32 %v161, %v230
  %v232 = vpop.f32.mrf.mxu0
  %233 = vdwg.mxu0
  %v234 = vmax.f32 %v231, 0.0
  %v235 = vld [vmem:[%s3] sm:$0xff]
  %v236 = vld [vmem:[%s3 + $0x8] sm:$0xff]
  %v237 = vld [vmem:[%s3 + $0x10] sm:$0xff]
  %v238 = vld [vmem:[%s3 + $0x18] sm:$0xff]
  %v239 = vld [vmem:[%s3 + $0x20] sm:$0xff]
  %v240 = vld [vmem:[%s3 + $0x28] sm:$0xff]
  %v241 = vld [vmem:[%s3 + $0x30] sm:$0xff]
  %v242 = vld [vmem:[%s3 + $0x38] sm:$0xff]
  %v243 = vld [vmem:[%s3 + $0x40] sm:$0x3f]
  %v244 = vld [vmem:[%s4] sm:$0x1]
  %v246 = vlaneseq
  %v247 = vshrl.u32 %v246, 7
  %v248 = vsub.s32 0, %v247
  %v249 = vrot.slane %v244, %v248
  %vm251 = vcmask 572416
  %v253 = vsel %vm251, %v234, 0
  %v256 = vsel %vm90, %v243, 0
  %258 = vmatprep.subr.mxu0 0.0
  %259 = vmatpush1.msra.mxu0 0.0
  %260 = vmatprep.subr.mxu0 0.0
  %261 = vmatpush1.msra.mxu0 0.0
  %262 = vmatprep.subr.mxu0 0.0
  %263 = vmatpush1.msra.mxu0 0.0
  %264 = vmatprep.subr.mxu0 0.0
  %265 = vmatpush1.msra.mxu0 0.0
  %266 = vmatprep.subr.mxu0 0.0
  %267 = vmatpush1.msra.mxu0 0.0
  %268 = vmatprep.subr.mxu0 0.0
  %269 = vmatpush1.msra.mxu0 0.0
  %270 = vmatprep.subr.mxu0 0.0
  %271 = vmatpush1.msra.mxu0 0.0
  %272 = vmatprep.subr.mxu0 0.0
  %273 = vmatpush1.msra.mxu0 %v256
  %274 = vmatprep.subr.mxu0 0.0
  %275 = vmatpush1.msra.mxu0 %v242
  %276 = vmatprep.subr.mxu0 0.0
  %277 = vmatpush1.msra.mxu0 %v241
  %278 = vmatprep.subr.mxu0 0.0
  %279 = vmatpush1.msra.mxu0 %v240
  %280 = vmatprep.subr.mxu0 0.0
  %281 = vmatpush1.msra.mxu0 %v239
  %282 = vmatprep.subr.mxu0 0.0
  %283 = vmatpush1.msra.mxu0 %v238
  %284 = vmatprep.subr.mxu0 0.0
  %285 = vmatpush1.msra.mxu0 %v237
  %286 = vmatprep.subr.mxu0 0.0
  %287 = vmatpush1.msra.mxu0 %v236
  %288 = vmatprep.subr.mxu0 0.0
  %289 = vmatpush1.msra.mxu0 %v235
  %290 = vmatprep.subr.mxu0 0.0
  %291 = vmatpush2.msra.mxu0 0.0
  %292 = vmatprep.subr.mxu0 0.0
  %293 = vmatpush2.msra.mxu0 0.0
  %294 = vmatprep.subr.mxu0 0.0
  %295 = vmatpush2.msra.mxu0 0.0
  %296 = vmatprep.subr.mxu0 0.0
  %297 = vmatpush2.msra.mxu0 0.0
  %298 = vmatprep.subr.mxu0 0.0
  %299 = vmatpush2.msra.mxu0 0.0
  %300 = vmatprep.subr.mxu0 0.0
  %301 = vmatpush2.msra.mxu0 0.0
  %302 = vmatprep.subr.mxu0 0.0
  %303 = vmatpush2.msra.mxu0 0.0
  %304 = vmatprep.subr.mxu0 0.0
  %305 = vmatpush2.msra.mxu0 0.0
  %306 = vmatprep.subr.mxu0 0.0
  %307 = vmatpush2.msra.mxu0 0.0
  %308 = vmatprep.subr.mxu0 0.0
  %309 = vmatpush2.msra.mxu0 0.0
  %310 = vmatprep.subr.mxu0 0.0
  %311 = vmatpush2.msra.mxu0 0.0
  %312 = vmatprep.subr.mxu0 0.0
  %313 = vmatpush2.msra.mxu0 0.0
  %314 = vmatprep.subr.mxu0 0.0
  %315 = vmatpush2.msra.mxu0 0.0
  %316 = vmatprep.subr.mxu0 0.0
  %317 = vmatpush2.msra.mxu0 0.0
  %318 = vmatprep.subr.mxu0 0.0
  %319 = vmatpush2.msra.mxu0 0.0
  %320 = vmatprep.subr.mxu0 0.0
  %321 = vmatpush2.msra.mxu0 0.0
  %322 = vmatprep.mubr.f32.mxu0 0.0
  %323 = vmatmul.mubr.f32.gmra.mxu0 %v253
  %v324 = vpop.f32.mrf.mxu0
  %v325 = vadd.f32 %v249, %v324
  %v326 = vpop.f32.mrf.mxu0
  %327 = vdwg.mxu0
  %vm328 = vcmask 15360
  %329 = vst.msk [vmem:[%s5] sm:$0xff] %vm328, %v325
  // Predicated region
  $region22: #{tpu_custom_call.1} parent=0 // pred_check
    _
  $region23: #{tpu_custom_call.1} parent=0 // pred_check_branch
    %331 = sbr.rel (0) target = $region25
  $region24: #{tpu_custom_call.1} parent=0 // pred_region
    _
  $region25: #{tpu_custom_call.1} parent=0 // pred_fallthru
    _
  // Predicated region
  $region26: #{tpu_custom_call.1} parent=0 // pred_check
    _
  $region27: #{tpu_custom_call.1} parent=0 // pred_check_branch
    %333 = sbr.rel (0) target = $region29
  $region28: #{tpu_custom_call.1} parent=0 // pred_region
    _
  $region29: #{tpu_custom_call.1} parent=0 // pred_fallthru
    _

</llo_original>
